<compile_context>
chip_gen: v7x
topology: tpu7x:2x2x1
jax: 0.10.0
libtpu: 0.0.40
codegen_flags: <defaults>
</compile_context>

<pallas_src>
import functools

import jax
import jax.numpy as jnp
from jax.experimental import pallas as pl
from jax.experimental.pallas import tpu as pltpu

N_EES = 19


def _round_up(x, m):
    return ((x + m - 1) // m) * m


def _deespine_actor_kernel(
    max_actions,
    state_ref,          # (TB, S)        bf16
    w1_ref,             # (S, 400)       bf16
    w2_ref,             # (400, 300)     bf16
    w3_ref,             # (300, 19)      bf16
    wg_ref,             # (19, 3*128)    bf16   [r | z | n], lane-padded gates
    b123_ref,           # (3, 512)       f32    rows: b1 | b2 | b3 (lane-padded)
    bg_ref,             # (2, 3*128)     f32    row0: [bir+bhr|biz+bhz|bin], row1: [bhn|0|0]
    out_ref,            # (TB, H)        f32
):
    f32 = jnp.float32
    bf16 = jnp.bfloat16

    hp = wg_ref.shape[1] // 3          # per-gate lane block (128)
    h_out = out_ref.shape[1]
    d1 = w1_ref.shape[1]
    d2 = w2_ref.shape[1]
    n_ees = w3_ref.shape[1]

    x = state_ref[...]                                              # (TB, S) bf16

    # l1 -> relu
    h1 = jnp.dot(x, w1_ref[...], preferred_element_type=f32)
    h1 = jnp.maximum(h1 + b123_ref[0:1, :d1], 0.0)                  # (TB, 400)

    # l2 -> relu
    h2 = jnp.dot(h1.astype(bf16), w2_ref[...], preferred_element_type=f32)
    h2 = jnp.maximum(h2 + b123_ref[1:2, :d2], 0.0)                  # (TB, 300)

    # l3 -> relu (n_ees = 19)
    h3 = jnp.dot(h2.astype(bf16), w3_ref[...], preferred_element_type=f32)
    h3 = jnp.maximum(h3 + b123_ref[2:3, :n_ees], 0.0)               # (TB, 19)

    # Fused GRU input-gate matmul.  h0 = 0  =>  h0 @ W_hh == 0, only the
    # hidden biases survive; b_hr / b_hz are pre-folded into bg row 0.
    g = jnp.dot(h3.astype(bf16), wg_ref[...], preferred_element_type=f32)
    g = g + bg_ref[0:1, :]                                          # (TB, 3*hp)

    r = jax.nn.sigmoid(g[:, 0:hp])                                  # tile-aligned splits
    z = jax.nn.sigmoid(g[:, hp:2 * hp])
    n = jnp.tanh(g[:, 2 * hp:3 * hp] + r * bg_ref[1:2, 0:hp])
    h_new = (1.0 - z) * n                                           # + z * h0 (= 0)

    out = max_actions * jnp.tanh(h_new)                             # (TB, hp)
    out_ref[...] = out[:, :h_out]


def deespine_actor_forward(state, params, *, max_actions, action_dim):
    """state: (B, state_dim) f32 -> (B, action_dim) f32."""
    B, S = state.shape
    H = int(action_dim)

    # Weights are VMEM-resident bf16; the state tile is the only per-step
    # streaming input -> ship it bf16 (halves HBM->VMEM traffic, removes the
    # in-kernel cast).
    state = state.astype(jnp.bfloat16)

    # Batch tile: 16-row granularity (bf16 native sublane tile), cap 1024.
    TB = min(1024, _round_up(B, 16))
    # v7x has 2 TensorCores; the "parallel" batch axis only helps if grid >= 2.
    if B > 16 and _round_up(B, TB) == TB:
        TB = _round_up((B + 1) // 2, 16)
    B_pad = _round_up(B, TB)
    if B_pad != B:
        state = jnp.pad(state, ((0, B_pad - B), (0, 0)))
    grid = (B_pad // TB,)

    args = (
        state,
        params["w1"], params["w2"], params["w3"], params["w_gru"],
        params["b123"], params["b_gru"],
    )

    def resident(a):
        # Full-array block with a constant index_map: loaded into VMEM once
        # and reused across all grid steps (no per-step re-DMA).
        return pl.BlockSpec(a.shape, lambda i: (0, 0))

    in_specs = [pl.BlockSpec((TB, S), lambda i: (i, 0))]
    in_specs += [resident(a) for a in args[1:]]
    out_specs = pl.BlockSpec((TB, H), lambda i: (i, 0))

    d1 = params["w1"].shape[1]
    d2 = params["w2"].shape[1]
    n_ees = params["w3"].shape[1]
    g3 = params["w_gru"].shape[1]
    param_bytes = sum(int(a.size) * a.dtype.itemsize for a in args[1:])
    cost = pl.CostEstimate(
        flops=2 * B_pad * (S * d1 + d1 * d2 + d2 * n_ees + n_ees * g3),
        transcendentals=4 * B_pad * (g3 // 3),   # 2 sigmoid + 2 tanh per row
        bytes_accessed=param_bytes + B_pad * S * 2 + B_pad * H * 4,
    )

    kernel = functools.partial(_deespine_actor_kernel, float(max_actions))
    out = pl.pallas_call(
        kernel,
        out_shape=jax.ShapeDtypeStruct((B_pad, H), jnp.float32),
        grid=grid,
        in_specs=in_specs,
        out_specs=out_specs,
        compiler_params=pltpu.CompilerParams(
            dimension_semantics=("parallel",)),
        cost_estimate=cost,
    )(*args)
    return out[:B]


def init_params(key, state_dim, action_dim, n_ees=N_EES):
    """Deterministic synthetic parameters (shapes per DeeSpineActor.__init__).

    Returns (packed, ref):
      packed: kernel operands — bf16 weights, fused/lane-padded GRU gate
              weight, packed f32 bias arrays (b_hh_r / b_hh_z folded in).
      ref:    unpacked f32 tensors for the pure-JAX reference.
    """
    H = int(action_dim)
    HP = _round_up(max(H, 8), 128)          # per-gate lane block (128)
    B1P = _round_up(400, 128)               # packed MLP-bias row width (512)
    bf16, f32 = jnp.bfloat16, jnp.float32
    ks = jax.random.split(key, 15)

    def u(k, shape, fan_in):
        s = 1.0 / (float(fan_in) ** 0.5)
        return jax.random.uniform(k, shape, f32, -s, s)

    w1 = u(ks[0], (state_dim, 400), state_dim)
    b1 = u(ks[1], (1, 400), state_dim)
    w2 = u(ks[2], (400, 300), 400)
    b2 = u(ks[3], (1, 300), 400)
    w3 = u(ks[4], (300, n_ees), 300)
    b3 = u(ks[5], (1, n_ees), 300)
    # GRU cell, gate order [r | z | n]; distinct keys per bias so gate wiring
    # bugs are actually detectable by the self-test.
    w_ir = u(ks[6], (n_ees, H), H)
    w_iz = u(ks[7], (n_ees, H), H)
    w_in = u(ks[8], (n_ees, H), H)
    b_ir = u(ks[9], (1, H), H)
    b_iz = u(ks[10], (1, H), H)
    b_in = u(ks[11], (1, H), H)
    b_hr = u(ks[12], (1, H), H)
    b_hz = u(ks[13], (1, H), H)
    b_hn = u(ks[14], (1, H), H)

    def lanepad(x, width):
        return jnp.pad(x, ((0, 0), (0, width - x.shape[1])))

    # Fused GRU input weight: [r | z | n], each gate zero-padded to a 128-lane
    # block so the post-matmul gate splits are tile-aligned.
    w_gru = jnp.concatenate(
        [lanepad(w_ir, HP), lanepad(w_iz, HP), lanepad(w_in, HP)], axis=1)

    # Packed GRU biases: row 0 = [b_ir+b_hr | b_iz+b_hz | b_in] (hidden biases
    # of the sigmoid gates folded in), row 1 = [b_hn | 0 | 0] (kept separate —
    # it is multiplied by r inside the n-gate).
    bg0 = jnp.concatenate([lanepad(b_ir + b_hr, HP),
                           lanepad(b_iz + b_hz, HP),
                           lanepad(b_in, HP)], axis=1)
    bg1 = lanepad(lanepad(b_hn, HP), 3 * HP)
    b_gru = jnp.concatenate([bg0, bg1], axis=0)

    # Packed MLP biases: one (3, 512) array instead of three tiny DMAs.
    b123 = jnp.concatenate(
        [lanepad(b1, B1P), lanepad(b2, B1P), lanepad(b3, B1P)], axis=0)

    packed = {
        "w1": w1.astype(bf16), "w2": w2.astype(bf16), "w3": w3.astype(bf16),
        "w_gru": w_gru.astype(bf16), "b123": b123, "b_gru": b_gru,
    }
    ref = {
        "w1": w1, "b1": b1, "w2": w2, "b2": b2, "w3": w3, "b3": b3,
        "w_ir": w_ir, "w_iz": w_iz, "w_in": w_in,
        "b_ir": b_ir, "b_iz": b_iz, "b_in": b_in,
        "b_hr": b_hr, "b_hz": b_hz, "b_hn": b_hn,
    }
    return packed, ref


def reference_forward(state, p, *, max_actions):
    """Pure-JAX reference on UNPACKED weights (validates the kernel's gate
    fusion, bias folding and slicing), matching the kernel's bf16-input /
    f32-accumulate matmul numerics."""
    bf16, f32 = jnp.bfloat16, jnp.float32

    def mm(a, w):
        return jnp.dot(a.astype(bf16), w.astype(bf16),
                       preferred_element_type=f32)

    x = jnp.maximum(mm(state, p["w1"]) + p["b1"], 0.0)
    x = jnp.maximum(mm(x, p["w2"]) + p["b2"], 0.0)
    x = jnp.maximum(mm(x, p["w3"]) + p["b3"], 0.0)
    r = jax.nn.sigmoid(mm(x, p["w_ir"]) + p["b_ir"] + p["b_hr"])
    z = jax.nn.sigmoid(mm(x, p["w_iz"]) + p["b_iz"] + p["b_hz"])
    n = jnp.tanh(mm(x, p["w_in"]) + p["b_in"] + r * p["b_hn"])
    h = (1.0 - z) * n
    return max_actions * jnp.tanh(h)


if __name__ == "__main__":
    STATE_DIM = 32
    ACTION_DIM = 8
    MAX_ACTIONS = 2.0
    BATCH = 2

    key = jax.random.PRNGKey(0)
    k_params, k_state = jax.random.split(key)
    packed, ref_params = init_params(k_params, STATE_DIM, ACTION_DIM)
    state = jax.random.normal(k_state, (BATCH, STATE_DIM), jnp.float32)

    out = deespine_actor_forward(
        state, packed, max_actions=MAX_ACTIONS, action_dim=ACTION_DIM)
    out = jax.block_until_ready(out)

    ref = reference_forward(state, ref_params, max_actions=MAX_ACTIONS)
    assert out.shape == (BATCH, ACTION_DIM)
    # bf16 matmul inputs on both paths -> tolerance covers accumulation-order
    # and transcendental-approximation differences only.
    err = float(jnp.max(jnp.abs(out - ref)))
    assert jnp.allclose(out, ref, atol=2e-3, rtol=2e-3), err

    print("KERNEL_OK")
</pallas_src>

<mosaic_0001>
module attributes {stable_mosaic.version = 11 : i64} {
  func.func @_deespine_actor_kernel(%arg0: i32, %arg1: memref<16x32xbf16, #tpu.memory_space<vmem>>, %arg2: memref<32x400xbf16, #tpu.memory_space<vmem>>, %arg3: memref<400x300xbf16, #tpu.memory_space<vmem>>, %arg4: memref<300x19xbf16, #tpu.memory_space<vmem>>, %arg5: memref<19x384xbf16, #tpu.memory_space<vmem>>, %arg6: memref<3x512xf32, #tpu.memory_space<vmem>>, %arg7: memref<2x384xf32, #tpu.memory_space<vmem>>, %arg8: memref<16x8xf32, #tpu.memory_space<vmem>>) attributes {dimension_semantics = [#tpu.dimension_semantics<parallel>], iteration_bounds = array<i64: 1>, scalar_prefetch = 0 : i64, scratch_operands = 0 : i64, tpu.core_type = #tpu.core_type<tc>, window_params = [{transform_indices = @transform_0, window_bounds = array<i64: 16, 32>}, {pipeline_mode = #tpu.pipeline_mode<synchronous>, transform_indices = @transform_1, window_bounds = array<i64: 32, 400>}, {pipeline_mode = #tpu.pipeline_mode<synchronous>, transform_indices = @transform_2, window_bounds = array<i64: 400, 300>}, {pipeline_mode = #tpu.pipeline_mode<synchronous>, transform_indices = @transform_3, window_bounds = array<i64: 300, 19>}, {pipeline_mode = #tpu.pipeline_mode<synchronous>, transform_indices = @transform_4, window_bounds = array<i64: 19, 384>}, {pipeline_mode = #tpu.pipeline_mode<synchronous>, transform_indices = @transform_5, window_bounds = array<i64: 3, 512>}, {pipeline_mode = #tpu.pipeline_mode<synchronous>, transform_indices = @transform_6, window_bounds = array<i64: 2, 384>}, {transform_indices = @transform_7, window_bounds = array<i64: 16, 8>}]} {
    %c0 = arith.constant 0 : index
    %c0_0 = arith.constant 0 : index
    %0 = vector.load %arg1[%c0, %c0_0] : memref<16x32xbf16, #tpu.memory_space<vmem>>, vector<16x32xbf16>
    %c0_1 = arith.constant 0 : index
    %c0_2 = arith.constant 0 : index
    %1 = vector.load %arg2[%c0_1, %c0_2] : memref<32x400xbf16, #tpu.memory_space<vmem>>, vector<32x400xbf16>
    %cst = arith.constant dense<0.000000e+00> : vector<16x400xf32>
    %2 = tpu.matmul %0, %1, %cst {dimension_numbers = #tpu.dot_dimension_numbers<[1], [0], [0], [1], [0, 0, 1, 1], [], []>} : vector<16x32xbf16>, vector<32x400xbf16>, vector<16x400xf32> -> vector<16x400xf32>
    %c0_3 = arith.constant 0 : index
    %c0_4 = arith.constant 0 : index
    %3 = vector.load %arg6[%c0_3, %c0_4] : memref<3x512xf32, #tpu.memory_space<vmem>>, vector<1x400xf32>
    %4 = vector.broadcast %3 : vector<1x400xf32> to vector<16x400xf32>
    %5 = arith.addf %2, %4 : vector<16x400xf32>
    %cst_5 = arith.constant 0.000000e+00 : f32
    %6 = vector.broadcast %cst_5 : f32 to vector<16x400xf32>
    %7 = arith.maximumf %5, %6 : vector<16x400xf32>
    %8 = arith.truncf %7 : vector<16x400xf32> to vector<16x400xbf16>
    %c0_6 = arith.constant 0 : index
    %c0_7 = arith.constant 0 : index
    %9 = vector.load %arg3[%c0_6, %c0_7] : memref<400x300xbf16, #tpu.memory_space<vmem>>, vector<400x300xbf16>
    %cst_8 = arith.constant dense<0.000000e+00> : vector<16x300xf32>
    %10 = tpu.matmul %8, %9, %cst_8 {dimension_numbers = #tpu.dot_dimension_numbers<[1], [0], [0], [1], [0, 0, 1, 1], [], []>} : vector<16x400xbf16>, vector<400x300xbf16>, vector<16x300xf32> -> vector<16x300xf32>
    %c1 = arith.constant 1 : index
    %c0_9 = arith.constant 0 : index
    %11 = vector.load %arg6[%c1, %c0_9] : memref<3x512xf32, #tpu.memory_space<vmem>>, vector<1x300xf32>
    %12 = vector.broadcast %11 : vector<1x300xf32> to vector<16x300xf32>
    %13 = arith.addf %10, %12 : vector<16x300xf32>
    %cst_10 = arith.constant 0.000000e+00 : f32
    %14 = vector.broadcast %cst_10 : f32 to vector<16x300xf32>
    %15 = arith.maximumf %13, %14 : vector<16x300xf32>
    %16 = arith.truncf %15 : vector<16x300xf32> to vector<16x300xbf16>
    %c0_11 = arith.constant 0 : index
    %c0_12 = arith.constant 0 : index
    %17 = vector.load %arg4[%c0_11, %c0_12] : memref<300x19xbf16, #tpu.memory_space<vmem>>, vector<300x19xbf16>
    %cst_13 = arith.constant dense<0.000000e+00> : vector<16x19xf32>
    %18 = tpu.matmul %16, %17, %cst_13 {dimension_numbers = #tpu.dot_dimension_numbers<[1], [0], [0], [1], [0, 0, 1, 1], [], []>} : vector<16x300xbf16>, vector<300x19xbf16>, vector<16x19xf32> -> vector<16x19xf32>
    %c2 = arith.constant 2 : index
    %c0_14 = arith.constant 0 : index
    %19 = vector.load %arg6[%c2, %c0_14] : memref<3x512xf32, #tpu.memory_space<vmem>>, vector<1x19xf32>
    %20 = vector.broadcast %19 : vector<1x19xf32> to vector<16x19xf32>
    %21 = arith.addf %18, %20 : vector<16x19xf32>
    %cst_15 = arith.constant 0.000000e+00 : f32
    %22 = vector.broadcast %cst_15 : f32 to vector<16x19xf32>
    %23 = arith.maximumf %21, %22 : vector<16x19xf32>
    %24 = arith.truncf %23 : vector<16x19xf32> to vector<16x19xbf16>
    %c0_16 = arith.constant 0 : index
    %c0_17 = arith.constant 0 : index
    %25 = vector.load %arg5[%c0_16, %c0_17] : memref<19x384xbf16, #tpu.memory_space<vmem>>, vector<19x384xbf16>
    %cst_18 = arith.constant dense<0.000000e+00> : vector<16x384xf32>
    %26 = tpu.matmul %24, %25, %cst_18 {dimension_numbers = #tpu.dot_dimension_numbers<[1], [0], [0], [1], [0, 0, 1, 1], [], []>} : vector<16x19xbf16>, vector<19x384xbf16>, vector<16x384xf32> -> vector<16x384xf32>
    %c0_19 = arith.constant 0 : index
    %c0_20 = arith.constant 0 : index
    %27 = vector.load %arg7[%c0_19, %c0_20] : memref<2x384xf32, #tpu.memory_space<vmem>>, vector<1x384xf32>
    %28 = vector.broadcast %27 : vector<1x384xf32> to vector<16x384xf32>
    %29 = arith.addf %26, %28 : vector<16x384xf32>
    %30 = vector.extract_strided_slice %29 {offsets = [0, 0], sizes = [16, 128], strides = [1, 1]} : vector<16x384xf32> to vector<16x128xf32>
    %31 = arith.negf %30 : vector<16x128xf32>
    %32 = math.exp %31 : vector<16x128xf32>
    %cst_21 = arith.constant 1.000000e+00 : f32
    %33 = vector.broadcast %cst_21 : f32 to vector<16x128xf32>
    %34 = arith.addf %33, %32 : vector<16x128xf32>
    %35 = arith.divf %33, %34 : vector<16x128xf32>
    %36 = vector.extract_strided_slice %29 {offsets = [0, 128], sizes = [16, 128], strides = [1, 1]} : vector<16x384xf32> to vector<16x128xf32>
    %37 = arith.negf %36 : vector<16x128xf32>
    %38 = math.exp %37 : vector<16x128xf32>
    %cst_22 = arith.constant 1.000000e+00 : f32
    %39 = vector.broadcast %cst_22 : f32 to vector<16x128xf32>
    %40 = arith.addf %39, %38 : vector<16x128xf32>
    %41 = arith.divf %39, %40 : vector<16x128xf32>
    %42 = vector.extract_strided_slice %29 {offsets = [0, 256], sizes = [16, 128], strides = [1, 1]} : vector<16x384xf32> to vector<16x128xf32>
    %c1_23 = arith.constant 1 : index
    %c0_24 = arith.constant 0 : index
    %43 = vector.load %arg7[%c1_23, %c0_24] : memref<2x384xf32, #tpu.memory_space<vmem>>, vector<1x128xf32>
    %44 = vector.broadcast %43 : vector<1x128xf32> to vector<16x128xf32>
    %45 = arith.mulf %35, %44 : vector<16x128xf32>
    %46 = arith.addf %42, %45 : vector<16x128xf32>
    %47 = math.tanh %46 : vector<16x128xf32>
    %cst_25 = arith.constant 1.000000e+00 : f32
    %48 = vector.broadcast %cst_25 : f32 to vector<16x128xf32>
    %49 = arith.subf %48, %41 : vector<16x128xf32>
    %50 = arith.mulf %49, %47 : vector<16x128xf32>
    %51 = math.tanh %50 : vector<16x128xf32>
    %cst_26 = arith.constant 2.000000e+00 : f32
    %52 = vector.broadcast %cst_26 : f32 to vector<16x128xf32>
    %53 = arith.mulf %52, %51 : vector<16x128xf32>
    %54 = vector.extract_strided_slice %53 {offsets = [0, 0], sizes = [16, 8], strides = [1, 1]} : vector<16x128xf32> to vector<16x8xf32>
    %c0_27 = arith.constant 0 : index
    %c0_28 = arith.constant 0 : index
    %55 = vector.load %arg8[%c0_27, %c0_28] : memref<16x8xf32, #tpu.memory_space<vmem>>, vector<16x8xf32>
    tpu.vector_store %arg8[%c0_27, %c0_28], %54 {strides = array<i32>} : memref<16x8xf32, #tpu.memory_space<vmem>>, vector<16x8xf32>,
    return
  }
  func.func @transform_0(%arg0: i32) -> (i32, i32) {
    %c0_i32 = arith.constant 0 : i32
    %c0_i32_0 = arith.constant 0 : i32
    return %arg0, %c0_i32 : i32, i32
  }
  func.func @transform_1(%arg0: i32) -> (i32, i32) {
    %c0_i32 = arith.constant 0 : i32
    %c0_i32_0 = arith.constant 0 : i32
    %c0_i32_1 = arith.constant 0 : i32
    return %c0_i32, %c0_i32_0 : i32, i32
  }
  func.func @transform_2(%arg0: i32) -> (i32, i32) {
    %c0_i32 = arith.constant 0 : i32
    %c0_i32_0 = arith.constant 0 : i32
    %c0_i32_1 = arith.constant 0 : i32
    return %c0_i32, %c0_i32_0 : i32, i32
  }
  func.func @transform_3(%arg0: i32) -> (i32, i32) {
    %c0_i32 = arith.constant 0 : i32
    %c0_i32_0 = arith.constant 0 : i32
    %c0_i32_1 = arith.constant 0 : i32
    return %c0_i32, %c0_i32_0 : i32, i32
  }
  func.func @transform_4(%arg0: i32) -> (i32, i32) {
    %c0_i32 = arith.constant 0 : i32
    %c0_i32_0 = arith.constant 0 : i32
    %c0_i32_1 = arith.constant 0 : i32
    return %c0_i32, %c0_i32_0 : i32, i32
  }
  func.func @transform_5(%arg0: i32) -> (i32, i32) {
    %c0_i32 = arith.constant 0 : i32
    %c0_i32_0 = arith.constant 0 : i32
    %c0_i32_1 = arith.constant 0 : i32
    return %c0_i32, %c0_i32_0 : i32, i32
  }
  func.func @transform_6(%arg0: i32) -> (i32, i32) {
    %c0_i32 = arith.constant 0 : i32
    %c0_i32_0 = arith.constant 0 : i32
    %c0_i32_1 = arith.constant 0 : i32
    return %c0_i32, %c0_i32_0 : i32, i32
  }
  func.func @transform_7(%arg0: i32) -> (i32, i32) {
    %c0_i32 = arith.constant 0 : i32
    %c0_i32_0 = arith.constant 0 : i32
    return %arg0, %c0_i32 : i32, i32
  }
}

</mosaic_0001>

<llo_original>
// kernel: tpu_custom_call.1
$region0: #{tpu_custom_call.1}
  #allocation0 [shape = 'u32[]', space=smem, size = 0x4, offset = 0x4, fixed_abs, tag = 'smem constant byte address 0x4 - core index']
  #allocation1 [shape = 'u32[144,128]{1,0:T(1,128)}', space=vmem, size = 0x12000, scoped, tag = 'internal scratch']
  %s0 = inlined_call_operand.vmem [shape: bf16[16,32], index: 0, kind: input, shape index: {}]
  %s1 = inlined_call_operand.vmem [shape: bf16[32,400], index: 1, kind: input, shape index: {}]
  %s2 = inlined_call_operand.hbm [shape: bf16[400,300], index: 2, kind: input, shape index: {}]
  %s3 = inlined_call_operand.vmem [shape: bf16[300,19], index: 3, kind: input, shape index: {}]
  %s4 = inlined_call_operand.vmem [shape: bf16[19,384], index: 4, kind: input, shape index: {}]
  %s5 = inlined_call_operand.vmem [shape: f32[3,512], index: 5, kind: input, shape index: {}]
  %s6 = inlined_call_operand.vmem [shape: f32[2,384], index: 6, kind: input, shape index: {}]
  %s7 = inlined_call_operand.vmem [shape: f32[16,8], index: 7, kind: output, shape index: {}]
  %s8 = sld [smem:[#allocation0]]
  $region42: #{tpu_custom_call.1} parent=0
    _
  %s10 = ssub.s32 1, %s8
  %s11 = scalar_select 0, %s10, %s8
  $region1: #{tpu_custom_call.1} parent=0
    #allocation2 [shape = 'u8[307200]{0}', space=vmem, size = 0x4b000, scoped, tag = 'input window, operand 2, single buffered']
    #allocation3 [shape = 's32[1]{0}', space=sflag, size = 0x4, scoped, tag = 'scoped memory for tpu_custom_call.1']
    %12 = vsyncpa [#allocation3], 0
    // Predicated region
    $region2: #{tpu_custom_call.1} parent=1 // pred_check
      _
    $region3: #{tpu_custom_call.1} parent=1 // pred_check_branch
      %14 = sbr.rel (0) target = $region5
    $region4: #{tpu_custom_call.1} parent=1 // pred_region
      _
    $region5: #{tpu_custom_call.1} parent=1 // pred_fallthru
      _
    // Predicated region
    $region6: #{tpu_custom_call.1} parent=1 // pred_check
      _
    $region7: #{tpu_custom_call.1} parent=1 // pred_check_branch
      %16 = sbr.rel (0) target = $region9
    $region8: #{tpu_custom_call.1} parent=1 // pred_region
      _
    $region9: #{tpu_custom_call.1} parent=1 // pred_fallthru
      _
    // Predicated region
    $region10: #{tpu_custom_call.1} parent=1 // pred_check
      _
    $region11: #{tpu_custom_call.1} parent=1 // pred_check_branch
      %18 = sbr.rel (0) target = $region13
    $region12: #{tpu_custom_call.1} parent=1 // pred_region
      %s20 = ssub.s32 9600, 9600
      %21 = vsyncadd [#allocation3], %s20
      %s22 = sshll.u32 [#allocation2], 4
      %s23 = int_to_ptr.vmem [resolvable:$true] %s22
      %28 = dma.hbm_to_vmem [thread:$0]  %s2, 9600, %s23, [#allocation3], 192, 192, 12
    $region13: #{tpu_custom_call.1} parent=1 // pred_fallthru
      _
    // Predicated region
    $region14: #{tpu_custom_call.1} parent=1 // pred_check
      _
    $region15: #{tpu_custom_call.1} parent=1 // pred_check_branch
      %30 = sbr.rel (0) target = $region17
    $region16: #{tpu_custom_call.1} parent=1 // pred_region
      _
    $region17: #{tpu_custom_call.1} parent=1 // pred_fallthru
      _
    // Predicated region
    $region18: #{tpu_custom_call.1} parent=1 // pred_check
      _
    $region19: #{tpu_custom_call.1} parent=1 // pred_check_branch
      %32 = sbr.rel (0) target = $region21
    $region20: #{tpu_custom_call.1} parent=1 // pred_region
      _
    $region21: #{tpu_custom_call.1} parent=1 // pred_fallthru
      _
    // Predicated region
    $region22: #{tpu_custom_call.1} parent=1 // pred_check
      _
    $region23: #{tpu_custom_call.1} parent=1 // pred_check_branch
      %34 = sbr.rel (0) target = $region25
    $region24: #{tpu_custom_call.1} parent=1 // pred_region
      _
    $region25: #{tpu_custom_call.1} parent=1 // pred_fallthru
      _
    // Predicated region
    $region26: #{tpu_custom_call.1} parent=1 // pred_check
      _
    $region27: #{tpu_custom_call.1} parent=1 // pred_check_branch
      %36 = sbr.rel (0) target = $region29
    $region28: #{tpu_custom_call.1} parent=1 // pred_region
      _
    $region29: #{tpu_custom_call.1} parent=1 // pred_fallthru
      _
    // Predicated region
    $region30: #{tpu_custom_call.1} parent=1 // pred_check
      _
    $region31: #{tpu_custom_call.1} parent=1 // pred_check_branch
      %38 = sbr.rel (0) target = $region33
    $region32: #{tpu_custom_call.1} parent=1 // pred_region
      %39 = dma.done [#allocation3], 9600
    $region33: #{tpu_custom_call.1} parent=1 // pred_fallthru
      _
    %v41 = vld [vmem:[%s0] sm:$0xf]
    %v42 = vld [vmem:[%s0 + $0x4] sm:$0xf]
    %v43 = vld [vmem:[%s1] sm:$0xff]
    %v44 = vld [vmem:[%s1 + $0x8] sm:$0xff]
    %v45 = vld [vmem:[%s1 + $0x10] sm:$0xff]
    %v46 = vld [vmem:[%s1 + $0x18] sm:$0xff]
    %v47 = vld [vmem:[%s1 + $0x20] sm:$0xff]
    %v48 = vld [vmem:[%s1 + $0x28] sm:$0xff]
    %v49 = vld [vmem:[%s1 + $0x30] sm:$0xff]
    %v50 = vld [vmem:[%s1 + $0x38] sm:$0xff]
    %v51 = vld [vmem:[%s5] ss:$4 sm:$0xf]
    %v53 = vlaneseq
    %v54 = vshrl.u32 %v53, 7
    %v55 = vsub.s32 0, %v54
    %v56 = vrot.slane %v51, %v55
    %v57 = vlaneseq
    %v58 = vshrl.u32 %v57, 7
    %v59 = vsub.s32 1, %v58
    %v60 = vrot.slane %v51, %v59
    %v61 = vlaneseq
    %v62 = vshrl.u32 %v61, 7
    %v63 = vsub.s32 2, %v62
    %v64 = vrot.slane %v51, %v63
    %v65 = vlaneseq
    %v66 = vshrl.u32 %v65, 7
    %v67 = vsub.s32 3, %v66
    %v68 = vrot.slane %v51, %v67
    %v75 = vunpack.c.l.b16 %v41
    %v76 = vunpack.c.l.b16 %v42
    %v77 = vpack.c.b16 %v76, %v75
    %v86 = vunpack.c.l.b16 %v43
    %v87 = vunpack.c.h.b16 %v43
    %v88 = vunpack.c.l.b16 %v44
    %v89 = vunpack.c.h.b16 %v44
    %v90 = vunpack.c.l.b16 %v45
    %v91 = vunpack.c.h.b16 %v45
    %v92 = vunpack.c.l.b16 %v46
    %v93 = vunpack.c.h.b16 %v46
    %v94 = vunpack.c.l.b16 %v47
    %v95 = vunpack.c.h.b16 %v47
    %v96 = vunpack.c.l.b16 %v48
    %v97 = vunpack.c.h.b16 %v48
    %v98 = vunpack.c.l.b16 %v49
    %v99 = vunpack.c.h.b16 %v49
    %v100 = vunpack.c.l.b16 %v50
    %v101 = vunpack.c.h.b16 %v50
    %v102 = vpack.c.b16 %v90, %v86
    %v103 = vpack.c.b16 %v91, %v87
    %v104 = vpack.c.b16 %v92, %v88
    %v105 = vpack.c.b16 %v93, %v89
    %v106 = vpack.c.b16 %v98, %v94
    %v107 = vpack.c.b16 %v99, %v95
    %v108 = vpack.c.b16 %v100, %v96
    %v109 = vpack.c.b16 %v101, %v97
    %vm118 = vcmask 261120
    %v120 = vsel %vm118, %v77, 0
    %122 = vmatprep.subr.bf16.mxu0 %v103
    %123 = vmatpush1.bf16.msra.mxu0 %v102
    %124 = vmatprep.subr.bf16.mxu0 %v107
    %125 = vmatpush1.bf16.msra.mxu0 %v106
    %126 = vmatprep.subr.bf16.mxu0 0
    %127 = vmatpush1.bf16.msra.mxu0 0
    %128 = vmatprep.subr.bf16.mxu0 0
    %129 = vmatpush1.bf16.msra.mxu0 0
    %130 = vmatprep.subr.bf16.mxu0 0
    %131 = vmatpush1.bf16.msra.mxu0 0
    %132 = vmatprep.subr.bf16.mxu0 0
    %133 = vmatpush1.bf16.msra.mxu0 0
    %134 = vmatprep.subr.bf16.mxu0 0
    %135 = vmatpush1.bf16.msra.mxu0 0
    %136 = vmatprep.subr.bf16.mxu0 0
    %137 = vmatpush1.bf16.msra.mxu0 0
    %138 = vmatprep.subr.bf16.mxu0 0
    %139 = vmatpush1.bf16.msra.mxu0 0
    %140 = vmatprep.subr.bf16.mxu0 0
    %141 = vmatpush1.bf16.msra.mxu0 0
    %142 = vmatprep.subr.bf16.mxu0 0
    %143 = vmatpush1.bf16.msra.mxu0 0
    %144 = vmatprep.subr.bf16.mxu0 0
    %145 = vmatpush1.bf16.msra.mxu0 0
    %146 = vmatprep.subr.bf16.mxu0 0
    %147 = vmatpush1.bf16.msra.mxu0 0
    %148 = vmatprep.subr.bf16.mxu0 0
    %149 = vmatpush1.bf16.msra.mxu0 0
    %150 = vmatprep.subr.bf16.mxu0 0
    %151 = vmatpush1.bf16.msra.mxu0 0
    %152 = vmatprep.subr.bf16.mxu0 0
    %153 = vmatpush1.bf16.msra.mxu0 0
    %154 = vmatprep.mubr.bf16.mxu0 0
    %155 = vmatmul.mubr.bf16.gmra.mrb[0].mxu0 %v120
    %v156 = vpop.f32.mrb[0].mxu0
    %v157 = vadd.f32 %v56, %v156
    %v158 = vpop.f32.mrb[0].mxu0
    %v159 = vadd.f32 %v60, %v158
    %v160 = vpop.f32.mrb[0].mxu0
    %v161 = vadd.f32 %v56, %v160
    %v162 = vpop.f32.mrb[0].mxu0
    %v163 = vadd.f32 %v60, %v162
    %164 = vdwg.mxu0
    %165 = vmatprep.subr.bf16.mxu0 %v105
    %166 = vmatpush1.bf16.msra.mxu0 %v104
    %167 = vmatprep.subr.bf16.mxu0 %v109
    %168 = vmatpush1.bf16.msra.mxu0 %v108
    %169 = vmatprep.subr.bf16.mxu0 0
    %170 = vmatpush1.bf16.msra.mxu0 0
    %171 = vmatprep.subr.bf16.mxu0 0
    %172 = vmatpush1.bf16.msra.mxu0 0
    %173 = vmatprep.subr.bf16.mxu0 0
    %174 = vmatpush1.bf16.msra.mxu0 0
    %175 = vmatprep.subr.bf16.mxu0 0
    %176 = vmatpush1.bf16.msra.mxu0 0
    %177 = vmatprep.subr.bf16.mxu0 0
    %178 = vmatpush1.bf16.msra.mxu0 0
    %179 = vmatprep.subr.bf16.mxu0 0
    %180 = vmatpush1.bf16.msra.mxu0 0
    %181 = vmatprep.subr.bf16.mxu0 0
    %182 = vmatpush1.bf16.msra.mxu0 0
    %183 = vmatprep.subr.bf16.mxu0 0
    %184 = vmatpush1.bf16.msra.mxu0 0
    %185 = vmatprep.subr.bf16.mxu0 0
    %186 = vmatpush1.bf16.msra.mxu0 0
    %187 = vmatprep.subr.bf16.mxu0 0
    %188 = vmatpush1.bf16.msra.mxu0 0
    %189 = vmatprep.subr.bf16.mxu0 0
    %190 = vmatpush1.bf16.msra.mxu0 0
    %191 = vmatprep.subr.bf16.mxu0 0
    %192 = vmatpush1.bf16.msra.mxu0 0
    %193 = vmatprep.subr.bf16.mxu0 0
    %194 = vmatpush1.bf16.msra.mxu0 0
    %195 = vmatprep.subr.bf16.mxu0 0
    %196 = vmatpush1.bf16.msra.mxu0 0
    %197 = vmatprep.mubr.bf16.mxu0 0
    %198 = vmatmul.mubr.bf16.gmra.mrb[0].mxu0 %v120
    %v199 = vpop.f32.mrb[0].mxu0
    %v200 = vadd.f32 %v64, %v199
    %v201 = vpop.f32.mrb[0].mxu0
    %v202 = vadd.f32 %v68, %v201
    %v203 = vpop.f32.mrb[0].mxu0
    %v204 = vadd.f32 %v64, %v203
    %v205 = vpop.f32.mrb[0].mxu0
    %v206 = vadd.f32 %v68, %v205
    %207 = vdwg.mxu0
    %v208 = vmax.f32 %v157, 0.0
    %v209 = vmax.f32 %v159, 0.0
    %v210 = vmax.f32 %v200, 0.0
    %v211 = vmax.f32 %v202, 0.0
    %v212 = vmax.f32 %v161, 0.0
    %v213 = vmax.f32 %v163, 0.0
    %v214 = vmax.f32 %v204, 0.0
    %v215 = vmax.f32 %v206, 0.0
    %v216 = vpack.c.bf16 %v212, %v208
    %v217 = vpack.c.bf16 %v213, %v209
    %v218 = vpack.c.bf16 %v214, %v210
    %v219 = vpack.c.bf16 %v215, %v211
    %v220 = vld [vmem:[#allocation2] sm:$0xff]
    %v221 = vld [vmem:[#allocation2 + $0x8] sm:$0xf]
    %v222 = vld [vmem:[#allocation2 + $0xc] sm:$0xff]
    %v223 = vld [vmem:[#allocation2 + $0x14] sm:$0xf]
    %v224 = vld [vmem:[#allocation2 + $0x18] sm:$0xff]
    %v225 = vld [vmem:[#allocation2 + $0x20] sm:$0xf]
    %v226 = vld [vmem:[#allocation2 + $0x24] sm:$0xff]
    %v227 = vld [vmem:[#allocation2 + $0x2c] sm:$0xf]
    %v228 = vld [vmem:[#allocation2 + $0x30] sm:$0xff]
    %v229 = vld [vmem:[#allocation2 + $0x38] sm:$0xf]
    %v230 = vld [vmem:[#allocation2 + $0x3c] sm:$0xff]
    %v231 = vld [vmem:[#allocation2 + $0x44] sm:$0xf]
    %v232 = vld [vmem:[#allocation2 + $0x48] sm:$0xff]
    %v233 = vld [vmem:[#allocation2 + $0x50] sm:$0xf]
    %v234 = vld [vmem:[#allocation2 + $0x54] sm:$0xff]
    %v235 = vld [vmem:[#allocation2 + $0x5c] sm:$0xf]
    %v236 = vld [vmem:[#allocation2 + $0x60] sm:$0xff]
    %v237 = vld [vmem:[#allocation2 + $0x68] sm:$0xf]
    %v238 = vld [vmem:[#allocation2 + $0x6c] sm:$0xff]
    %v239 = vld [vmem:[#allocation2 + $0x74] sm:$0xf]
    %v240 = vld [vmem:[#allocation2 + $0x78] sm:$0xff]
    %v241 = vld [vmem:[#allocation2 + $0x80] sm:$0xf]
    %v242 = vld [vmem:[#allocation2 + $0x84] sm:$0xff]
    %v243 = vld [vmem:[#allocation2 + $0x8c] sm:$0xf]
    %v244 = vld [vmem:[#allocation2 + $0x90] sm:$0xff]
    %v245 = vld [vmem:[#allocation2 + $0x98] sm:$0xf]
    %v246 = vld [vmem:[#allocation2 + $0x9c] sm:$0xff]
    %v247 = vld [vmem:[#allocation2 + $0xa4] sm:$0xf]
    %v248 = vld [vmem:[#allocation2 + $0xa8] sm:$0xff]
    %v249 = vld [vmem:[#allocation2 + $0xb0] sm:$0xf]
    %v250 = vld [vmem:[#allocation2 + $0xb4] sm:$0xff]
    %v251 = vld [vmem:[#allocation2 + $0xbc] sm:$0xf]
    %v252 = vld [vmem:[#allocation2 + $0xc0] sm:$0xff]
    %v253 = vld [vmem:[#allocation2 + $0xc8] sm:$0xf]
    %v254 = vld [vmem:[#allocation2 + $0xcc] sm:$0xff]
    %v255 = vld [vmem:[#allocation2 + $0xd4] sm:$0xf]
    %v256 = vld [vmem:[#allocation2 + $0xd8] sm:$0xff]
    %v257 = vld [vmem:[#allocation2 + $0xe0] sm:$0xf]
    %v258 = vld [vmem:[#allocation2 + $0xe4] sm:$0xff]
    %v259 = vld [vmem:[#allocation2 + $0xec] sm:$0xf]
    %v260 = vld [vmem:[#allocation2 + $0xf0] sm:$0xff]
    %v261 = vld [vmem:[#allocation2 + $0xf8] sm:$0xf]
    %v262 = vld [vmem:[#allocation2 + $0xfc] sm:$0xff]
    %v263 = vld [vmem:[#allocation2 + $0x104] sm:$0xf]
    %v264 = vld [vmem:[#allocation2 + $0x108] sm:$0xff]
    %v265 = vld [vmem:[#allocation2 + $0x110] sm:$0xf]
    %v266 = vld [vmem:[#allocation2 + $0x114] sm:$0xff]
    %v267 = vld [vmem:[#allocation2 + $0x11c] sm:$0xf]
    %v268 = vld [vmem:[#allocation2 + $0x120] sm:$0xff]
    %v269 = vld [vmem:[#allocation2 + $0x128] sm:$0xf]
    %v270 = vld [vmem:[#allocation2 + $0x12c] sm:$0xff]
    %v271 = vld [vmem:[#allocation2 + $0x134] sm:$0xf]
    %v272 = vld [vmem:[#allocation2 + $0x138] sm:$0xff]
    %v273 = vld [vmem:[#allocation2 + $0x140] sm:$0xf]
    %v274 = vld [vmem:[#allocation2 + $0x144] sm:$0xff]
    %v275 = vld [vmem:[#allocation2 + $0x14c] sm:$0xf]
    %v276 = vld [vmem:[#allocation2 + $0x150] sm:$0xff]
    %v277 = vld [vmem:[#allocation2 + $0x158] sm:$0xf]
    %v278 = vld [vmem:[#allocation2 + $0x15c] sm:$0xff]
    %v279 = vld [vmem:[#allocation2 + $0x164] sm:$0xf]
    %v280 = vld [vmem:[#allocation2 + $0x168] sm:$0xff]
    %v281 = vld [vmem:[#allocation2 + $0x170] sm:$0xf]
    %v282 = vld [vmem:[#allocation2 + $0x174] sm:$0xff]
    %v283 = vld [vmem:[#allocation2 + $0x17c] sm:$0xf]
    %v284 = vld [vmem:[#allocation2 + $0x180] sm:$0xff]
    %v285 = vld [vmem:[#allocation2 + $0x188] sm:$0xf]
    %v286 = vld [vmem:[#allocation2 + $0x18c] sm:$0xff]
    %v287 = vld [vmem:[#allocation2 + $0x194] sm:$0xf]
    %v288 = vld [vmem:[#allocation2 + $0x198] sm:$0xff]
    %v289 = vld [vmem:[#allocation2 + $0x1a0] sm:$0xf]
    %v290 = vld [vmem:[#allocation2 + $0x1a4] sm:$0xff]
    %v291 = vld [vmem:[#allocation2 + $0x1ac] sm:$0xf]
    %v292 = vld [vmem:[#allocation2 + $0x1b0] sm:$0xff]
    %v293 = vld [vmem:[#allocation2 + $0x1b8] sm:$0xf]
    %v294 = vld [vmem:[#allocation2 + $0x1bc] sm:$0xff]
    %v295 = vld [vmem:[#allocation2 + $0x1c4] sm:$0xf]
    %v296 = vld [vmem:[#allocation2 + $0x1c8] sm:$0xff]
    %v297 = vld [vmem:[#allocation2 + $0x1d0] sm:$0xf]
    %v298 = vld [vmem:[#allocation2 + $0x1d4] sm:$0xff]
    %v299 = vld [vmem:[#allocation2 + $0x1dc] sm:$0xf]
    %v300 = vld [vmem:[#allocation2 + $0x1e0] sm:$0xff]
    %v301 = vld [vmem:[#allocation2 + $0x1e8] sm:$0xf]
    %v302 = vld [vmem:[#allocation2 + $0x1ec] sm:$0xff]
    %v303 = vld [vmem:[#allocation2 + $0x1f4] sm:$0xf]
    %v304 = vld [vmem:[#allocation2 + $0x1f8] sm:$0xff]
    %v305 = vld [vmem:[#allocation2 + $0x200] sm:$0xf]
    %v306 = vld [vmem:[#allocation2 + $0x204] sm:$0xff]
    %v307 = vld [vmem:[#allocation2 + $0x20c] sm:$0xf]
    %v308 = vld [vmem:[#allocation2 + $0x210] sm:$0xff]
    %v309 = vld [vmem:[#allocation2 + $0x218] sm:$0xf]
    %v310 = vld [vmem:[#allocation2 + $0x21c] sm:$0xff]
    %v311 = vld [vmem:[#allocation2 + $0x224] sm:$0xf]
    %v312 = vld [vmem:[#allocation2 + $0x228] sm:$0xff]
    %v313 = vld [vmem:[#allocation2 + $0x230] sm:$0xf]
    %v314 = vld [vmem:[#allocation2 + $0x234] sm:$0xff]
    %v315 = vld [vmem:[#allocation2 + $0x23c] sm:$0xf]
    %v316 = vld [vmem:[#allocation2 + $0x240] sm:$0xff]
    %v317 = vld [vmem:[#allocation2 + $0x248] sm:$0xf]
    %v318 = vld [vmem:[#allocation2 + $0x24c] sm:$0xff]
    %v319 = vld [vmem:[#allocation2 + $0x254] sm:$0xf]
    %s320 = scalar_lea.vmem %s5, 1
    %v321 = vld [vmem:[%s320] ss:$4 sm:$0x7]
    %v323 = vlaneseq
    %v324 = vshrl.u32 %v323, 7
    %v325 = vsub.s32 0, %v324
    %v326 = vrot.slane %v321, %v325
    %v327 = vlaneseq
    %v328 = vshrl.u32 %v327, 7
    %v329 = vsub.s32 1, %v328
    %v330 = vrot.slane %v321, %v329
    %v331 = vlaneseq
    %v332 = vshrl.u32 %v331, 7
    %v333 = vsub.s32 2, %v332
    %v334 = vrot.slane %v321, %v333
    %v438 = vunpack.c.l.b16 %v220
    %v439 = vunpack.c.h.b16 %v220
    %v440 = vunpack.c.l.b16 %v221
    %v441 = vunpack.c.l.b16 %v222
    %v442 = vunpack.c.h.b16 %v222
    %v443 = vunpack.c.l.b16 %v223
    %v444 = vunpack.c.l.b16 %v224
    %v445 = vunpack.c.h.b16 %v224
    %v446 = vunpack.c.l.b16 %v225
    %v447 = vunpack.c.l.b16 %v226
    %v448 = vunpack.c.h.b16 %v226
    %v449 = vunpack.c.l.b16 %v227
    %v450 = vunpack.c.l.b16 %v228
    %v451 = vunpack.c.h.b16 %v228
    %v452 = vunpack.c.l.b16 %v229
    %v453 = vunpack.c.l.b16 %v230
    %v454 = vunpack.c.h.b16 %v230
    %v455 = vunpack.c.l.b16 %v231
    %v456 = vunpack.c.l.b16 %v232
    %v457 = vunpack.c.h.b16 %v232
    %v458 = vunpack.c.l.b16 %v233
    %v459 = vunpack.c.l.b16 %v234
    %v460 = vunpack.c.h.b16 %v234
    %v461 = vunpack.c.l.b16 %v235
    %v462 = vunpack.c.l.b16 %v236
    %v463 = vunpack.c.h.b16 %v236
    %v464 = vunpack.c.l.b16 %v237
    %v465 = vunpack.c.l.b16 %v238
    %v466 = vunpack.c.h.b16 %v238
    %v467 = vunpack.c.l.b16 %v239
    %v468 = vunpack.c.l.b16 %v240
    %v469 = vunpack.c.h.b16 %v240
    %v470 = vunpack.c.l.b16 %v241
    %v471 = vunpack.c.l.b16 %v242
    %v472 = vunpack.c.h.b16 %v242
    %v473 = vunpack.c.l.b16 %v243
    %v474 = vunpack.c.l.b16 %v244
    %v475 = vunpack.c.h.b16 %v244
    %v476 = vunpack.c.l.b16 %v245
    %v477 = vunpack.c.l.b16 %v246
    %v478 = vunpack.c.h.b16 %v246
    %v479 = vunpack.c.l.b16 %v247
    %v480 = vunpack.c.l.b16 %v248
    %v481 = vunpack.c.h.b16 %v248
    %v482 = vunpack.c.l.b16 %v249
    %v483 = vunpack.c.l.b16 %v250
    %v484 = vunpack.c.h.b16 %v250
    %v485 = vunpack.c.l.b16 %v251
    %v486 = vunpack.c.l.b16 %v252
    %v487 = vunpack.c.h.b16 %v252
    %v488 = vunpack.c.l.b16 %v253
    %v489 = vunpack.c.l.b16 %v254
    %v490 = vunpack.c.h.b16 %v254
    %v491 = vunpack.c.l.b16 %v255
    %v492 = vunpack.c.l.b16 %v256
    %v493 = vunpack.c.h.b16 %v256
    %v494 = vunpack.c.l.b16 %v257
    %v495 = vunpack.c.l.b16 %v258
    %v496 = vunpack.c.h.b16 %v258
    %v497 = vunpack.c.l.b16 %v259
    %v498 = vunpack.c.l.b16 %v260
    %v499 = vunpack.c.h.b16 %v260
    %v500 = vunpack.c.l.b16 %v261
    %v501 = vunpack.c.l.b16 %v262
    %v502 = vunpack.c.h.b16 %v262
    %v503 = vunpack.c.l.b16 %v263
    %v504 = vunpack.c.l.b16 %v264
    %v505 = vunpack.c.h.b16 %v264
    %v506 = vunpack.c.l.b16 %v265
    %v507 = vunpack.c.l.b16 %v266
    %v508 = vunpack.c.h.b16 %v266
    %v509 = vunpack.c.l.b16 %v267
    %v510 = vunpack.c.l.b16 %v268
    %v511 = vunpack.c.h.b16 %v268
    %v512 = vunpack.c.l.b16 %v269
    %v513 = vunpack.c.l.b16 %v270
    %v514 = vunpack.c.h.b16 %v270
    %v515 = vunpack.c.l.b16 %v271
    %v516 = vunpack.c.l.b16 %v272
    %v517 = vunpack.c.h.b16 %v272
    %v518 = vunpack.c.l.b16 %v273
    %v519 = vunpack.c.l.b16 %v274
    %v520 = vunpack.c.h.b16 %v274
    %v521 = vunpack.c.l.b16 %v275
    %v522 = vunpack.c.l.b16 %v276
    %v523 = vunpack.c.h.b16 %v276
    %v524 = vunpack.c.l.b16 %v277
    %v525 = vunpack.c.l.b16 %v278
    %v526 = vunpack.c.h.b16 %v278
    %v527 = vunpack.c.l.b16 %v279
    %v528 = vunpack.c.l.b16 %v280
    %v529 = vunpack.c.h.b16 %v280
    %v530 = vunpack.c.l.b16 %v281
    %v531 = vunpack.c.l.b16 %v282
    %v532 = vunpack.c.h.b16 %v282
    %v533 = vunpack.c.l.b16 %v283
    %v534 = vunpack.c.l.b16 %v284
    %v535 = vunpack.c.h.b16 %v284
    %v536 = vunpack.c.l.b16 %v285
    %v537 = vunpack.c.l.b16 %v286
    %v538 = vunpack.c.h.b16 %v286
    %v539 = vunpack.c.l.b16 %v287
    %v540 = vunpack.c.l.b16 %v288
    %v541 = vunpack.c.h.b16 %v288
    %v542 = vunpack.c.l.b16 %v289
    %v543 = vunpack.c.l.b16 %v290
    %v544 = vunpack.c.h.b16 %v290
    %v545 = vunpack.c.l.b16 %v291
    %v546 = vunpack.c.l.b16 %v292
    %v547 = vunpack.c.h.b16 %v292
    %v548 = vunpack.c.l.b16 %v293
    %v549 = vunpack.c.l.b16 %v294
    %v550 = vunpack.c.h.b16 %v294
    %v551 = vunpack.c.l.b16 %v295
    %v552 = vunpack.c.l.b16 %v296
    %v553 = vunpack.c.h.b16 %v296
    %v554 = vunpack.c.l.b16 %v297
    %v555 = vunpack.c.l.b16 %v298
    %v556 = vunpack.c.h.b16 %v298
    %v557 = vunpack.c.l.b16 %v299
    %v558 = vunpack.c.l.b16 %v300
    %v559 = vunpack.c.h.b16 %v300
    %v560 = vunpack.c.l.b16 %v301
    %v561 = vunpack.c.l.b16 %v302
    %v562 = vunpack.c.h.b16 %v302
    %v563 = vunpack.c.l.b16 %v303
    %v564 = vunpack.c.l.b16 %v304
    %v565 = vunpack.c.h.b16 %v304
    %v566 = vunpack.c.l.b16 %v305
    %v567 = vunpack.c.l.b16 %v306
    %v568 = vunpack.c.h.b16 %v306
    %v569 = vunpack.c.l.b16 %v307
    %v570 = vunpack.c.l.b16 %v308
    %v571 = vunpack.c.h.b16 %v308
    %v572 = vunpack.c.l.b16 %v309
    %v573 = vunpack.c.l.b16 %v310
    %v574 = vunpack.c.h.b16 %v310
    %v575 = vunpack.c.l.b16 %v311
    %v576 = vunpack.c.l.b16 %v312
    %v577 = vunpack.c.h.b16 %v312
    %v578 = vunpack.c.l.b16 %v313
    %v579 = vunpack.c.l.b16 %v314
    %v580 = vunpack.c.h.b16 %v314
    %v581 = vunpack.c.l.b16 %v315
    %v582 = vunpack.c.l.b16 %v316
    %v583 = vunpack.c.h.b16 %v316
    %v584 = vunpack.c.l.b16 %v317
    %v585 = vunpack.c.l.b16 %v318
    %v586 = vunpack.c.h.b16 %v318
    %v587 = vunpack.c.l.b16 %v319
    %v588 = vpack.c.b16 %v441, %v438
    %v589 = vpack.c.b16 %v442, %v439
    %v590 = vpack.c.b16 %v443, %v440
    %v591 = vpack.c.b16 %v447, %v444
    %v592 = vpack.c.b16 %v448, %v445
    %v593 = vpack.c.b16 %v449, %v446
    %v594 = vpack.c.b16 %v453, %v450
    %v595 = vpack.c.b16 %v454, %v451
    %v596 = vpack.c.b16 %v455, %v452
    %v597 = vpack.c.b16 %v459, %v456
    %v598 = vpack.c.b16 %v460, %v457
    %v599 = vpack.c.b16 %v461, %v458
    %v600 = vpack.c.b16 %v465, %v462
    %v601 = vpack.c.b16 %v466, %v463
    %v602 = vpack.c.b16 %v467, %v464
    %v603 = vpack.c.b16 %v471, %v468
    %v604 = vpack.c.b16 %v472, %v469
    %v605 = vpack.c.b16 %v473, %v470
    %v606 = vpack.c.b16 %v477, %v474
    %v607 = vpack.c.b16 %v478, %v475
    %v608 = vpack.c.b16 %v479, %v476
    %v609 = vpack.c.b16 %v483, %v480
    %v610 = vpack.c.b16 %v484, %v481
    %v611 = vpack.c.b16 %v485, %v482
    %v612 = vpack.c.b16 %v489, %v486
    %v613 = vpack.c.b16 %v490, %v487
    %v614 = vpack.c.b16 %v491, %v488
    %v615 = vpack.c.b16 %v495, %v492
    %v616 = vpack.c.b16 %v496, %v493
    %v617 = vpack.c.b16 %v497, %v494
    %v618 = vpack.c.b16 %v501, %v498
    %v619 = vpack.c.b16 %v502, %v499
    %v620 = vpack.c.b16 %v503, %v500
    %v621 = vpack.c.b16 %v507, %v504
    %v622 = vpack.c.b16 %v508, %v505
    %v623 = vpack.c.b16 %v509, %v506
    %v624 = vpack.c.b16 %v513, %v510
    %v625 = vpack.c.b16 %v514, %v511
    %v626 = vpack.c.b16 %v515, %v512
    %v627 = vpack.c.b16 %v519, %v516
    %v628 = vpack.c.b16 %v520, %v517
    %v629 = vpack.c.b16 %v521, %v518
    %v630 = vpack.c.b16 %v525, %v522
    %v631 = vpack.c.b16 %v526, %v523
    %v632 = vpack.c.b16 %v527, %v524
    %v633 = vpack.c.b16 %v531, %v528
    %v634 = vpack.c.b16 %v532, %v529
    %v635 = vpack.c.b16 %v533, %v530
    %v636 = vpack.c.b16 %v537, %v534
    %v637 = vpack.c.b16 %v538, %v535
    %v638 = vpack.c.b16 %v539, %v536
    %v639 = vpack.c.b16 %v543, %v540
    %v640 = vpack.c.b16 %v544, %v541
    %v641 = vpack.c.b16 %v545, %v542
    %v642 = vpack.c.b16 %v549, %v546
    %v643 = vpack.c.b16 %v550, %v547
    %v644 = vpack.c.b16 %v551, %v548
    %v645 = vpack.c.b16 %v555, %v552
    %v646 = vpack.c.b16 %v556, %v553
    %v647 = vpack.c.b16 %v557, %v554
    %v648 = vpack.c.b16 %v561, %v558
    %v649 = vpack.c.b16 %v562, %v559
    %v650 = vpack.c.b16 %v563, %v560
    %v651 = vpack.c.b16 %v567, %v564
    %v652 = vpack.c.b16 %v568, %v565
    %v653 = vpack.c.b16 %v569, %v566
    %v654 = vpack.c.b16 %v573, %v570
    %v655 = vpack.c.b16 %v574, %v571
    %v656 = vpack.c.b16 %v575, %v572
    %v657 = vpack.c.b16 %v579, %v576
    %v658 = vpack.c.b16 %v580, %v577
    %v659 = vpack.c.b16 %v581, %v578
    %v660 = vpack.c.b16 %v585, %v582
    %v661 = vpack.c.b16 %v586, %v583
    %v662 = vpack.c.b16 %v587, %v584
    %vm738 = vcmask 130048
    %v740 = vsel %vm738, %v219, 0
    %742 = vmatprep.subr.bf16.mxu0 %v589
    %743 = vmatpush1.bf16.msra.mxu0 %v588
    %744 = vmatprep.subr.bf16.mxu0 %v592
    %745 = vmatpush1.bf16.msra.mxu0 %v591
    %746 = vmatprep.subr.bf16.mxu0 %v595
    %747 = vmatpush1.bf16.msra.mxu0 %v594
    %748 = vmatprep.subr.bf16.mxu0 %v598
    %749 = vmatpush1.bf16.msra.mxu0 %v597
    %750 = vmatprep.subr.bf16.mxu0 %v601
    %751 = vmatpush1.bf16.msra.mxu0 %v600
    %752 = vmatprep.subr.bf16.mxu0 %v604
    %753 = vmatpush1.bf16.msra.mxu0 %v603
    %754 = vmatprep.subr.bf16.mxu0 %v607
    %755 = vmatpush1.bf16.msra.mxu0 %v606
    %756 = vmatprep.subr.bf16.mxu0 %v610
    %757 = vmatpush1.bf16.msra.mxu0 %v609
    %758 = vmatprep.subr.bf16.mxu0 %v613
    %759 = vmatpush1.bf16.msra.mxu0 %v612
    %760 = vmatprep.subr.bf16.mxu0 %v616
    %761 = vmatpush1.bf16.msra.mxu0 %v615
    %762 = vmatprep.subr.bf16.mxu0 %v619
    %763 = vmatpush1.bf16.msra.mxu0 %v618
    %764 = vmatprep.subr.bf16.mxu0 %v622
    %765 = vmatpush1.bf16.msra.mxu0 %v621
    %766 = vmatprep.subr.bf16.mxu0 %v625
    %767 = vmatpush1.bf16.msra.mxu0 %v624
    %768 = vmatprep.subr.bf16.mxu0 %v628
    %769 = vmatpush1.bf16.msra.mxu0 %v627
    %770 = vmatprep.subr.bf16.mxu0 %v631
    %771 = vmatpush1.bf16.msra.mxu0 %v630
    %772 = vmatprep.subr.bf16.mxu0 %v634
    %773 = vmatpush1.bf16.msra.mxu0 %v633
    %774 = vmatprep.mubr.bf16.mxu0 %v217
    %775 = vmatmul.mubr.bf16.gmra.mrb[0].mxu0 %v216
    %v776 = vpop.f32.mrb[0].mxu0
    %v777 = vadd.f32 %v326, %v776
    %v778 = vpop.f32.mrb[0].mxu0
    %v779 = vadd.f32 %v330, %v778
    %v780 = vpop.f32.mrb[0].mxu0
    %v781 = vadd.f32 %v326, %v780
    %v782 = vpop.f32.mrb[0].mxu0
    %v783 = vadd.f32 %v330, %v782
    %784 = vdwg.mxu0
    %785 = vmatprep.subr.bf16.mxu0 %v637
    %786 = vmatpush1.bf16.msra.mxu0 %v636
    %787 = vmatprep.subr.bf16.mxu0 %v640
    %788 = vmatpush1.bf16.msra.mxu0 %v639
    %789 = vmatprep.subr.bf16.mxu0 %v643
    %790 = vmatpush1.bf16.msra.mxu0 %v642
    %791 = vmatprep.subr.bf16.mxu0 %v646
    %792 = vmatpush1.bf16.msra.mxu0 %v645
    %793 = vmatprep.subr.bf16.mxu0 %v649
    %794 = vmatpush1.bf16.msra.mxu0 %v648
    %795 = vmatprep.subr.bf16.mxu0 %v652
    %796 = vmatpush1.bf16.msra.mxu0 %v651
    %797 = vmatprep.subr.bf16.mxu0 %v655
    %798 = vmatpush1.bf16.msra.mxu0 %v654
    %799 = vmatprep.subr.bf16.mxu0 %v658
    %800 = vmatpush1.bf16.msra.mxu0 %v657
    %801 = vmatprep.subr.bf16.mxu0 %v661
    %802 = vmatpush1.bf16.msra.mxu0 %v660
    %803 = vmatprep.subr.bf16.mxu0 0
    %804 = vmatpush1.bf16.msra.mxu0 0
    %805 = vmatprep.subr.bf16.mxu0 0
    %806 = vmatpush1.bf16.msra.mxu0 0
    %807 = vmatprep.subr.bf16.mxu0 0
    %808 = vmatpush1.bf16.msra.mxu0 0
    %809 = vmatprep.subr.bf16.mxu0 0
    %810 = vmatpush1.bf16.msra.mxu0 0
    %811 = vmatprep.subr.bf16.mxu0 0
    %812 = vmatpush1.bf16.msra.mxu0 0
    %813 = vmatprep.subr.bf16.mxu0 0
    %814 = vmatpush1.bf16.msra.mxu0 0
    %815 = vmatprep.subr.bf16.mxu0 0
    %816 = vmatpush1.bf16.msra.mxu0 0
    %817 = vmatprep.mubr.bf16.mxu0 %v740
    %818 = vmatmul.mubr.bf16.gmra.mrb[0].mxu0 %v218
    %v819 = vpop.f32.mrb[0].mxu0
    %v820 = vadd.f32 %v777, %v819
    %v821 = vpop.f32.mrb[0].mxu0
    %v822 = vadd.f32 %v779, %v821
    %v823 = vpop.f32.mrb[0].mxu0
    %v824 = vadd.f32 %v781, %v823
    %v825 = vpop.f32.mrb[0].mxu0
    %v826 = vadd.f32 %v783, %v825
    %827 = vdwg.mxu0
    %828 = vmatprep.subr.bf16.mxu0 0
    %829 = vmatpush1.bf16.msra.mxu0 %v590
    %830 = vmatprep.subr.bf16.mxu0 0
    %831 = vmatpush1.bf16.msra.mxu0 %v593
    %832 = vmatprep.subr.bf16.mxu0 0
    %833 = vmatpush1.bf16.msra.mxu0 %v596
    %834 = vmatprep.subr.bf16.mxu0 0
    %835 = vmatpush1.bf16.msra.mxu0 %v599
    %836 = vmatprep.subr.bf16.mxu0 0
    %837 = vmatpush1.bf16.msra.mxu0 %v602
    %838 = vmatprep.subr.bf16.mxu0 0
    %839 = vmatpush1.bf16.msra.mxu0 %v605
    %840 = vmatprep.subr.bf16.mxu0 0
    %841 = vmatpush1.bf16.msra.mxu0 %v608
    %842 = vmatprep.subr.bf16.mxu0 0
    %843 = vmatpush1.bf16.msra.mxu0 %v611
    %844 = vmatprep.subr.bf16.mxu0 0
    %845 = vmatpush1.bf16.msra.mxu0 %v614
    %846 = vmatprep.subr.bf16.mxu0 0
    %847 = vmatpush1.bf16.msra.mxu0 %v617
    %848 = vmatprep.subr.bf16.mxu0 0
    %849 = vmatpush1.bf16.msra.mxu0 %v620
    %850 = vmatprep.subr.bf16.mxu0 0
    %851 = vmatpush1.bf16.msra.mxu0 %v623
    %852 = vmatprep.subr.bf16.mxu0 0
    %853 = vmatpush1.bf16.msra.mxu0 %v626
    %854 = vmatprep.subr.bf16.mxu0 0
    %855 = vmatpush1.bf16.msra.mxu0 %v629
    %856 = vmatprep.subr.bf16.mxu0 0
    %857 = vmatpush1.bf16.msra.mxu0 %v632
    %858 = vmatprep.subr.bf16.mxu0 0
    %859 = vmatpush1.bf16.msra.mxu0 %v635
    %860 = vmatprep.mubr.bf16.mxu0 %v217
    %861 = vmatmul.mubr.bf16.gmra.mrb[0].mxu0 %v216
    %v862 = vpop.f32.mrb[0].mxu0
    %v863 = vadd.f32 %v334, %v862
    %v864 = vpop.f32.mrb[0].mxu0
    %v865 = vpop.f32.mrb[0].mxu0
    %v866 = vadd.f32 %v334, %v865
    %v867 = vpop.f32.mrb[0].mxu0
    %868 = vdwg.mxu0
    %869 = vmatprep.subr.bf16.mxu0 0
    %870 = vmatpush1.bf16.msra.mxu0 %v638
    %871 = vmatprep.subr.bf16.mxu0 0
    %872 = vmatpush1.bf16.msra.mxu0 %v641
    %873 = vmatprep.subr.bf16.mxu0 0
    %874 = vmatpush1.bf16.msra.mxu0 %v644
    %875 = vmatprep.subr.bf16.mxu0 0
    %876 = vmatpush1.bf16.msra.mxu0 %v647
    %877 = vmatprep.subr.bf16.mxu0 0
    %878 = vmatpush1.bf16.msra.mxu0 %v650
    %879 = vmatprep.subr.bf16.mxu0 0
    %880 = vmatpush1.bf16.msra.mxu0 %v653
    %881 = vmatprep.subr.bf16.mxu0 0
    %882 = vmatpush1.bf16.msra.mxu0 %v656
    %883 = vmatprep.subr.bf16.mxu0 0
    %884 = vmatpush1.bf16.msra.mxu0 %v659
    %885 = vmatprep.subr.bf16.mxu0 0
    %886 = vmatpush1.bf16.msra.mxu0 %v662
    %887 = vmatprep.subr.bf16.mxu0 0
    %888 = vmatpush1.bf16.msra.mxu0 0
    %889 = vmatprep.subr.bf16.mxu0 0
    %890 = vmatpush1.bf16.msra.mxu0 0
    %891 = vmatprep.subr.bf16.mxu0 0
    %892 = vmatpush1.bf16.msra.mxu0 0
    %893 = vmatprep.subr.bf16.mxu0 0
    %894 = vmatpush1.bf16.msra.mxu0 0
    %895 = vmatprep.subr.bf16.mxu0 0
    %896 = vmatpush1.bf16.msra.mxu0 0
    %897 = vmatprep.subr.bf16.mxu0 0
    %898 = vmatpush1.bf16.msra.mxu0 0
    %899 = vmatprep.subr.bf16.mxu0 0
    %900 = vmatpush1.bf16.msra.mxu0 0
    %901 = vmatprep.mubr.bf16.mxu0 %v740
    %902 = vmatmul.mubr.bf16.gmra.mrb[0].mxu0 %v218
    %v903 = vpop.f32.mrb[0].mxu0
    %v904 = vadd.f32 %v863, %v903
    %v905 = vpop.f32.mrb[0].mxu0
    %v906 = vpop.f32.mrb[0].mxu0
    %v907 = vadd.f32 %v866, %v906
    %v908 = vpop.f32.mrb[0].mxu0
    %909 = vdwg.mxu0
    %v910 = vmax.f32 %v820, 0.0
    %v911 = vmax.f32 %v822, 0.0
    %v912 = vmax.f32 %v904, 0.0
    %v913 = vmax.f32 %v824, 0.0
    %v914 = vmax.f32 %v826, 0.0
    %v915 = vmax.f32 %v907, 0.0
    %v916 = vpack.c.bf16 %v913, %v910
    %v917 = vpack.c.bf16 %v914, %v911
    %v918 = vpack.c.bf16 %v915, %v912
    %v919 = vld [vmem:[%s3] sm:$0xf]
    %v920 = vld [vmem:[%s3 + $0x4] sm:$0xf]
    %v921 = vld [vmem:[%s3 + $0x8] sm:$0xf]
    %v922 = vld [vmem:[%s3 + $0xc] sm:$0xf]
    %v923 = vld [vmem:[%s3 + $0x10] sm:$0xf]
    %v924 = vld [vmem:[%s3 + $0x14] sm:$0xf]
    %v925 = vld [vmem:[%s3 + $0x18] sm:$0xf]
    %v926 = vld [vmem:[%s3 + $0x1c] sm:$0xf]
    %v927 = vld [vmem:[%s3 + $0x20] sm:$0xf]
    %v928 = vld [vmem:[%s3 + $0x24] sm:$0xf]
    %v929 = vld [vmem:[%s3 + $0x28] sm:$0xf]
    %v930 = vld [vmem:[%s3 + $0x2c] sm:$0xf]
    %v931 = vld [vmem:[%s3 + $0x30] sm:$0xf]
    %v932 = vld [vmem:[%s3 + $0x34] sm:$0xf]
    %v933 = vld [vmem:[%s3 + $0x38] sm:$0xf]
    %v934 = vld [vmem:[%s3 + $0x3c] sm:$0xf]
    %v935 = vld [vmem:[%s3 + $0x40] sm:$0xf]
    %v936 = vld [vmem:[%s3 + $0x44] sm:$0xf]
    %v937 = vld [vmem:[%s3 + $0x48] sm:$0xf]
    %v938 = vld [vmem:[%s3 + $0x4c] sm:$0xf]
    %v939 = vld [vmem:[%s3 + $0x50] sm:$0xf]
    %v940 = vld [vmem:[%s3 + $0x54] sm:$0xf]
    %v941 = vld [vmem:[%s3 + $0x58] sm:$0xf]
    %v942 = vld [vmem:[%s3 + $0x5c] sm:$0xf]
    %v943 = vld [vmem:[%s3 + $0x60] sm:$0xf]
    %v944 = vld [vmem:[%s3 + $0x64] sm:$0xf]
    %v945 = vld [vmem:[%s3 + $0x68] sm:$0xf]
    %v946 = vld [vmem:[%s3 + $0x6c] sm:$0xf]
    %v947 = vld [vmem:[%s3 + $0x70] sm:$0xf]
    %v948 = vld [vmem:[%s3 + $0x74] sm:$0xf]
    %v949 = vld [vmem:[%s3 + $0x78] sm:$0xf]
    %v950 = vld [vmem:[%s3 + $0x7c] sm:$0xf]
    %v951 = vld [vmem:[%s3 + $0x80] sm:$0xf]
    %v952 = vld [vmem:[%s3 + $0x84] sm:$0xf]
    %v953 = vld [vmem:[%s3 + $0x88] sm:$0xf]
    %v954 = vld [vmem:[%s3 + $0x8c] sm:$0xf]
    %v955 = vld [vmem:[%s3 + $0x90] sm:$0xf]
    %v956 = vld [vmem:[%s3 + $0x94] sm:$0x3]
    %v957 = vld [vmem:[%s5 + $0x2] sm:$0x1]
    %v958 = vlaneseq
    %v959 = vshrl.u32 %v958, 7
    %v960 = vsub.s32 0, %v959
    %v961 = vrot.slane %v957, %v960
    %v1000 = vunpack.c.l.b16 %v919
    %v1001 = vunpack.c.l.b16 %v920
    %v1002 = vunpack.c.l.b16 %v921
    %v1003 = vunpack.c.l.b16 %v922
    %v1004 = vunpack.c.l.b16 %v923
    %v1005 = vunpack.c.l.b16 %v924
    %v1006 = vunpack.c.l.b16 %v925
    %v1007 = vunpack.c.l.b16 %v926
    %v1008 = vunpack.c.l.b16 %v927
    %v1009 = vunpack.c.l.b16 %v928
    %v1010 = vunpack.c.l.b16 %v929
    %v1011 = vunpack.c.l.b16 %v930
    %v1012 = vunpack.c.l.b16 %v931
    %v1013 = vunpack.c.l.b16 %v932
    %v1014 = vunpack.c.l.b16 %v933
    %v1015 = vunpack.c.l.b16 %v934
    %v1016 = vunpack.c.l.b16 %v935
    %v1017 = vunpack.c.l.b16 %v936
    %v1018 = vunpack.c.l.b16 %v937
    %v1019 = vunpack.c.l.b16 %v938
    %v1020 = vunpack.c.l.b16 %v939
    %v1021 = vunpack.c.l.b16 %v940
    %v1022 = vunpack.c.l.b16 %v941
    %v1023 = vunpack.c.l.b16 %v942
    %v1024 = vunpack.c.l.b16 %v943
    %v1025 = vunpack.c.l.b16 %v944
    %v1026 = vunpack.c.l.b16 %v945
    %v1027 = vunpack.c.l.b16 %v946
    %v1028 = vunpack.c.l.b16 %v947
    %v1029 = vunpack.c.l.b16 %v948
    %v1030 = vunpack.c.l.b16 %v949
    %v1031 = vunpack.c.l.b16 %v950
    %v1032 = vunpack.c.l.b16 %v951
    %v1033 = vunpack.c.l.b16 %v952
    %v1034 = vunpack.c.l.b16 %v953
    %v1035 = vunpack.c.l.b16 %v954
    %v1036 = vunpack.c.l.b16 %v955
    %v1037 = vunpack.c.l.b16 %v956
    %v1038 = vpack.c.b16 %v1001, %v1000
    %v1039 = vpack.c.b16 %v1003, %v1002
    %v1040 = vpack.c.b16 %v1005, %v1004
    %v1041 = vpack.c.b16 %v1007, %v1006
    %v1042 = vpack.c.b16 %v1009, %v1008
    %v1043 = vpack.c.b16 %v1011, %v1010
    %v1044 = vpack.c.b16 %v1013, %v1012
    %v1045 = vpack.c.b16 %v1015, %v1014
    %v1046 = vpack.c.b16 %v1017, %v1016
    %v1047 = vpack.c.b16 %v1019, %v1018
    %v1048 = vpack.c.b16 %v1021, %v1020
    %v1049 = vpack.c.b16 %v1023, %v1022
    %v1050 = vpack.c.b16 %v1025, %v1024
    %v1051 = vpack.c.b16 %v1027, %v1026
    %v1052 = vpack.c.b16 %v1029, %v1028
    %v1053 = vpack.c.b16 %v1031, %v1030
    %v1054 = vpack.c.b16 %v1033, %v1032
    %v1055 = vpack.c.b16 %v1035, %v1034
    %v1056 = vpack.c.b16 %v1037, %v1036
    %vm1075 = vcmask 359424
    %v1077 = vsel %vm1075, %v918, 0
    %vm1079 = vcmask 1045504
    %v1081 = vsel %vm1079, %v1056, 0
    %1083 = vmatprep.subr.bf16.mxu0 0
    %1084 = vmatpush1.bf16.msra.mxu0 %v1038
    %1085 = vmatprep.subr.bf16.mxu0 0
    %1086 = vmatpush1.bf16.msra.mxu0 %v1039
    %1087 = vmatprep.subr.bf16.mxu0 0
    %1088 = vmatpush1.bf16.msra.mxu0 %v1040
    %1089 = vmatprep.subr.bf16.mxu0 0
    %1090 = vmatpush1.bf16.msra.mxu0 %v1041
    %1091 = vmatprep.subr.bf16.mxu0 0
    %1092 = vmatpush1.bf16.msra.mxu0 %v1042
    %1093 = vmatprep.subr.bf16.mxu0 0
    %1094 = vmatpush1.bf16.msra.mxu0 %v1043
    %1095 = vmatprep.subr.bf16.mxu0 0
    %1096 = vmatpush1.bf16.msra.mxu0 %v1044
    %1097 = vmatprep.subr.bf16.mxu0 0
    %1098 = vmatpush1.bf16.msra.mxu0 %v1045
    %1099 = vmatprep.subr.bf16.mxu0 0
    %1100 = vmatpush1.bf16.msra.mxu0 %v1046
    %1101 = vmatprep.subr.bf16.mxu0 0
    %1102 = vmatpush1.bf16.msra.mxu0 %v1047
    %1103 = vmatprep.subr.bf16.mxu0 0
    %1104 = vmatpush1.bf16.msra.mxu0 %v1048
    %1105 = vmatprep.subr.bf16.mxu0 0
    %1106 = vmatpush1.bf16.msra.mxu0 %v1049
    %1107 = vmatprep.subr.bf16.mxu0 0
    %1108 = vmatpush1.bf16.msra.mxu0 %v1050
    %1109 = vmatprep.subr.bf16.mxu0 0
    %1110 = vmatpush1.bf16.msra.mxu0 %v1051
    %1111 = vmatprep.subr.bf16.mxu0 0
    %1112 = vmatpush1.bf16.msra.mxu0 %v1052
    %1113 = vmatprep.subr.bf16.mxu0 0
    %1114 = vmatpush1.bf16.msra.mxu0 %v1053
    %1115 = vmatprep.mubr.bf16.mxu0 %v917
    %1116 = vmatmul.mubr.bf16.gmra.mrb[0].mxu0 %v916
    %v1117 = vpop.f32.mrb[0].mxu0
    %v1118 = vadd.f32 %v961, %v1117
    %v1119 = vpop.f32.mrb[0].mxu0
    %v1120 = vpop.f32.mrb[0].mxu0
    %v1121 = vadd.f32 %v961, %v1120
    %v1122 = vpop.f32.mrb[0].mxu0
    %1123 = vdwg.mxu0
    %1124 = vmatprep.subr.bf16.mxu0 0
    %1125 = vmatpush1.bf16.msra.mxu0 %v1054
    %1126 = vmatprep.subr.bf16.mxu0 0
    %1127 = vmatpush1.bf16.msra.mxu0 %v1055
    %1128 = vmatprep.subr.bf16.mxu0 0
    %1129 = vmatpush1.bf16.msra.mxu0 %v1081
    %1130 = vmatprep.subr.bf16.mxu0 0
    %1131 = vmatpush1.bf16.msra.mxu0 0
    %1132 = vmatprep.subr.bf16.mxu0 0
    %1133 = vmatpush1.bf16.msra.mxu0 0
    %1134 = vmatprep.subr.bf16.mxu0 0
    %1135 = vmatpush1.bf16.msra.mxu0 0
    %1136 = vmatprep.subr.bf16.mxu0 0
    %1137 = vmatpush1.bf16.msra.mxu0 0
    %1138 = vmatprep.subr.bf16.mxu0 0
    %1139 = vmatpush1.bf16.msra.mxu0 0
    %1140 = vmatprep.subr.bf16.mxu0 0
    %1141 = vmatpush1.bf16.msra.mxu0 0
    %1142 = vmatprep.subr.bf16.mxu0 0
    %1143 = vmatpush1.bf16.msra.mxu0 0
    %1144 = vmatprep.subr.bf16.mxu0 0
    %1145 = vmatpush1.bf16.msra.mxu0 0
    %1146 = vmatprep.subr.bf16.mxu0 0
    %1147 = vmatpush1.bf16.msra.mxu0 0
    %1148 = vmatprep.subr.bf16.mxu0 0
    %1149 = vmatpush1.bf16.msra.mxu0 0
    %1150 = vmatprep.subr.bf16.mxu0 0
    %1151 = vmatpush1.bf16.msra.mxu0 0
    %1152 = vmatprep.subr.bf16.mxu0 0
    %1153 = vmatpush1.bf16.msra.mxu0 0
    %1154 = vmatprep.subr.bf16.mxu0 0
    %1155 = vmatpush1.bf16.msra.mxu0 0
    %1156 = vmatprep.mubr.bf16.mxu0 0
    %1157 = vmatmul.mubr.bf16.gmra.mrb[0].mxu0 %v1077
    %v1158 = vpop.f32.mrb[0].mxu0
    %v1159 = vadd.f32 %v1118, %v1158
    %v1160 = vpop.f32.mrb[0].mxu0
    %v1161 = vpop.f32.mrb[0].mxu0
    %v1162 = vadd.f32 %v1121, %v1161
    %v1163 = vpop.f32.mrb[0].mxu0
    %1164 = vdwg.mxu0
    %v1165 = vmax.f32 %v1159, 0.0
    %v1166 = vmax.f32 %v1162, 0.0
    %v1167 = vpack.c.bf16 %v1166, %v1165
    %v1168 = vld [vmem:[%s4] sm:$0xff]
    %v1169 = vld [vmem:[%s4 + $0x8] sm:$0xf]
    %v1170 = vld [vmem:[%s4 + $0xc] sm:$0xff]
    %v1171 = vld [vmem:[%s4 + $0x14] sm:$0xf]
    %v1172 = vld [vmem:[%s4 + $0x18] sm:$0x33]
    %v1173 = vld [vmem:[%s4 + $0x20] sm:$0x3]
    %v1174 = vld [vmem:[%s6] ss:$2 sm:$0x7]
    %v1176 = vlaneseq
    %v1177 = vshrl.u32 %v1176, 7
    %v1178 = vsub.s32 0, %v1177
    %v1179 = vrot.slane %v1174, %v1178
    %v1180 = vlaneseq
    %v1181 = vshrl.u32 %v1180, 7
    %v1182 = vsub.s32 1, %v1181
    %v1183 = vrot.slane %v1174, %v1182
    %v1184 = vlaneseq
    %v1185 = vshrl.u32 %v1184, 7
    %v1186 = vsub.s32 2, %v1185
    %v1187 = vrot.slane %v1174, %v1186
    %v1197 = vunpack.c.l.b16 %v1168
    %v1198 = vunpack.c.h.b16 %v1168
    %v1199 = vunpack.c.l.b16 %v1169
    %v1200 = vunpack.c.l.b16 %v1170
    %v1201 = vunpack.c.h.b16 %v1170
    %v1202 = vunpack.c.l.b16 %v1171
    %v1203 = vunpack.c.l.b16 %v1172
    %v1204 = vunpack.c.h.b16 %v1172
    %v1205 = vunpack.c.l.b16 %v1173
    %v1206 = vpack.c.b16 %v1200, %v1197
    %v1207 = vpack.c.b16 %v1201, %v1198
    %v1208 = vpack.c.b16 %v1202, %v1199
    %v1209 = vpack.c.b16 %v1203, %v1203
    %v1210 = vpack.c.b16 %v1204, %v1204
    %v1211 = vpack.c.b16 %v1205, %v1205
    %vm1215 = vcmask 154624
    %v1217 = vsel %vm1215, %v1167, 0
    %vm1219 = vcmask 1040384
    %vm1220 = vcmask 1041408
    %v1221 = vsel %vm1219, 4294967295, 65535
    %v1222 = vsel %vm1220, %v1221, 0
    %v1224 = vand.u32 %v1209, %v1222
    %v1227 = vand.u32 %v1210, %v1222
    %v1230 = vand.u32 %v1211, %v1222
    %1232 = vmatprep.subr.bf16.mxu0 %v1207
    %1233 = vmatpush1.bf16.msra.mxu0 %v1206
    %1234 = vmatprep.subr.bf16.mxu0 %v1227
    %1235 = vmatpush1.bf16.msra.mxu0 %v1224
    %1236 = vmatprep.subr.bf16.mxu0 0
    %1237 = vmatpush1.bf16.msra.mxu0 0
    %1238 = vmatprep.subr.bf16.mxu0 0
    %1239 = vmatpush1.bf16.msra.mxu0 0
    %1240 = vmatprep.subr.bf16.mxu0 0
    %1241 = vmatpush1.bf16.msra.mxu0 0
    %1242 = vmatprep.subr.bf16.mxu0 0
    %1243 = vmatpush1.bf16.msra.mxu0 0
    %1244 = vmatprep.subr.bf16.mxu0 0
    %1245 = vmatpush1.bf16.msra.mxu0 0
    %1246 = vmatprep.subr.bf16.mxu0 0
    %1247 = vmatpush1.bf16.msra.mxu0 0
    %1248 = vmatprep.subr.bf16.mxu0 0
    %1249 = vmatpush1.bf16.msra.mxu0 0
    %1250 = vmatprep.subr.bf16.mxu0 0
    %1251 = vmatpush1.bf16.msra.mxu0 0
    %1252 = vmatprep.subr.bf16.mxu0 0
    %1253 = vmatpush1.bf16.msra.mxu0 0
    %1254 = vmatprep.subr.bf16.mxu0 0
    %1255 = vmatpush1.bf16.msra.mxu0 0
    %1256 = vmatprep.subr.bf16.mxu0 0
    %1257 = vmatpush1.bf16.msra.mxu0 0
    %1258 = vmatprep.subr.bf16.mxu0 0
    %1259 = vmatpush1.bf16.msra.mxu0 0
    %1260 = vmatprep.subr.bf16.mxu0 0
    %1261 = vmatpush1.bf16.msra.mxu0 0
    %1262 = vmatprep.subr.bf16.mxu0 0
    %1263 = vmatpush1.bf16.msra.mxu0 0
    %1264 = vmatprep.mubr.bf16.mxu0 0
    %1265 = vmatmul.mubr.bf16.gmra.mrb[0].mxu0 %v1217
    %v1266 = vpop.f32.mrb[0].mxu0
    %v1267 = vadd.f32 %v1179, %v1266
    %v1268 = vpop.f32.mrb[0].mxu0
    %v1269 = vadd.f32 %v1183, %v1268
    %v1270 = vpop.f32.mrb[0].mxu0
    %v1271 = vadd.f32 %v1179, %v1270
    %v1272 = vpop.f32.mrb[0].mxu0
    %v1273 = vadd.f32 %v1183, %v1272
    %1274 = vdwg.mxu0
    %1275 = vmatprep.subr.bf16.mxu0 0
    %1276 = vmatpush1.bf16.msra.mxu0 %v1208
    %1277 = vmatprep.subr.bf16.mxu0 0
    %1278 = vmatpush1.bf16.msra.mxu0 %v1230
    %1279 = vmatprep.subr.bf16.mxu0 0
    %1280 = vmatpush1.bf16.msra.mxu0 0
    %1281 = vmatprep.subr.bf16.mxu0 0
    %1282 = vmatpush1.bf16.msra.mxu0 0
    %1283 = vmatprep.subr.bf16.mxu0 0
    %1284 = vmatpush1.bf16.msra.mxu0 0
    %1285 = vmatprep.subr.bf16.mxu0 0
    %1286 = vmatpush1.bf16.msra.mxu0 0
    %1287 = vmatprep.subr.bf16.mxu0 0
    %1288 = vmatpush1.bf16.msra.mxu0 0
    %1289 = vmatprep.subr.bf16.mxu0 0
    %1290 = vmatpush1.bf16.msra.mxu0 0
    %1291 = vmatprep.subr.bf16.mxu0 0
    %1292 = vmatpush1.bf16.msra.mxu0 0
    %1293 = vmatprep.subr.bf16.mxu0 0
    %1294 = vmatpush1.bf16.msra.mxu0 0
    %1295 = vmatprep.subr.bf16.mxu0 0
    %1296 = vmatpush1.bf16.msra.mxu0 0
    %1297 = vmatprep.subr.bf16.mxu0 0
    %1298 = vmatpush1.bf16.msra.mxu0 0
    %1299 = vmatprep.subr.bf16.mxu0 0
    %1300 = vmatpush1.bf16.msra.mxu0 0
    %1301 = vmatprep.subr.bf16.mxu0 0
    %1302 = vmatpush1.bf16.msra.mxu0 0
    %1303 = vmatprep.subr.bf16.mxu0 0
    %1304 = vmatpush1.bf16.msra.mxu0 0
    %1305 = vmatprep.subr.bf16.mxu0 0
    %1306 = vmatpush1.bf16.msra.mxu0 0
    %1307 = vmatprep.mubr.bf16.mxu0 0
    %1308 = vmatmul.mubr.bf16.gmra.mrb[0].mxu0 %v1217
    %v1309 = vpop.f32.mrb[0].mxu0
    %v1310 = vadd.f32 %v1187, %v1309
    %v1311 = vpop.f32.mrb[0].mxu0
    %v1312 = vpop.f32.mrb[0].mxu0
    %v1313 = vadd.f32 %v1187, %v1312
    %v1314 = vpop.f32.mrb[0].mxu0
    %1315 = vdwg.mxu0
    %v1316 = vxor.u32 %v1267, 2147483648
    %v1317 = vxor.u32 %v1271, 2147483648
    %v1318 = vmul.f32 %v1316, 1.442695
    %v1319 = vpow.pop %v1318
    %v1320 = vmul.f32 %v1317, 1.442695
    %v1321 = vpow.pop %v1320
    %v1322 = vadd.f32 %v1319, 1.0
    %v1323 = vadd.f32 %v1321, 1.0
    %v1324 = vrcp.pop %v1322
    %v1325 = vmul.f32 1.0, %v1324
    %v1326 = vrcp.pop %v1323
    %v1327 = vmul.f32 1.0, %v1326
    %v1328 = vxor.u32 %v1269, 2147483648
    %v1329 = vxor.u32 %v1273, 2147483648
    %v1330 = vmul.f32 %v1328, 1.442695
    %v1331 = vpow.pop %v1330
    %v1332 = vmul.f32 %v1329, 1.442695
    %v1333 = vpow.pop %v1332
    %v1334 = vadd.f32 %v1331, 1.0
    %v1335 = vadd.f32 %v1333, 1.0
    %v1336 = vrcp.pop %v1334
    %v1337 = vmul.f32 1.0, %v1336
    %v1338 = vrcp.pop %v1335
    %v1339 = vmul.f32 1.0, %v1338
    %v1340 = vld [vmem:[%s6 + $0x1] sm:$0x1]
    %v1341 = vlaneseq
    %v1342 = vshrl.u32 %v1341, 7
    %v1343 = vsub.s32 0, %v1342
    %v1344 = vrot.slane %v1340, %v1343
    %v1345 = vmul.f32 %v1325, %v1344
    %v1346 = vmul.f32 %v1327, %v1344
    %v1347 = vadd.f32 %v1310, %v1345
    %v1348 = vadd.f32 %v1313, %v1346
    %v1349 = vtanh.pop %v1347
    %v1350 = vtanh.pop %v1348
    %v1351 = vsub.f32 1.0, %v1337
    %v1352 = vsub.f32 1.0, %v1339
    %v1353 = vmul.f32 %v1351, %v1349
    %v1354 = vmul.f32 %v1352, %v1350
    %v1355 = vtanh.pop %v1353
    %v1356 = vtanh.pop %v1354
    %v1357 = vmul.f32 %v1355, 2.0
    %v1358 = vmul.f32 %v1356, 2.0
    %vm1359 = vcmask 64512
    %1360 = vst.msk [vmem:[%s7] sm:$0xff] %vm1359, %v1357
    %1361 = vst.msk [vmem:[%s7 + $0x8] sm:$0xff] %vm1359, %v1358
    // Predicated region
    $region34: #{tpu_custom_call.1} parent=1 // pred_check
      _
    $region35: #{tpu_custom_call.1} parent=1 // pred_check_branch
      %1363 = sbr.rel (0) target = $region37
    $region36: #{tpu_custom_call.1} parent=1 // pred_region
      _
    $region37: #{tpu_custom_call.1} parent=1 // pred_fallthru
      _
    // Predicated region
    $region38: #{tpu_custom_call.1} parent=1 // pred_check
      _
    $region39: #{tpu_custom_call.1} parent=1 // pred_check_branch
      %1365 = sbr.rel (0) target = $region41
    $region40: #{tpu_custom_call.1} parent=1 // pred_region
      _
    $region41: #{tpu_custom_call.1} parent=1 // pred_fallthru
      _
    %1366 = vsyncpa [#allocation3], 1

</llo_original>
